<compile_context>
chip_gen: v6e
topology: v6e:2x2x1
jax: 0.10.0
libtpu: 0.0.40
codegen_flags: <defaults>
</compile_context>

<pallas_src>
import functools

import jax
import jax.numpy as jnp
from jax.experimental import pallas as pl
from jax.experimental.pallas import tpu as pltpu


def _bce_label_smoothing_kernel(logits_ref, labels_ref, out_ref, *,
                                smoothing, valid_rows, valid_cols,
                                tile_rows, n_pad, need_mask):
    x = logits_ref[...].astype(jnp.float32)
    y0 = labels_ref[...].astype(jnp.float32)

    # Replicates the PyTorch in-place semantics (non-binary labels pass through):
    #   labels[labels == 1] = 1 - smoothing ; labels[labels == 0] = smoothing
    y = jnp.where(y0 == 1.0, jnp.float32(1.0 - smoothing), y0)
    y = jnp.where(y == 0.0, jnp.float32(smoothing), y)

    # Numerically-stable BCE-with-logits (same formula PyTorch uses):
    #   loss = max(x, 0) - x*y + log(1 + exp(-|x|))
    loss = jnp.maximum(x, 0.0) - x * y + jnp.log1p(jnp.exp(-jnp.abs(x)))

    if need_mask:
        i = pl.program_id(0)
        row = i * tile_rows + jax.lax.broadcasted_iota(jnp.int32, loss.shape, 0)
        col = jax.lax.broadcasted_iota(jnp.int32, loss.shape, 1)
        loss = jnp.where((row < valid_rows) & (col < valid_cols), loss, 0.0)

    # Pure-VPU partial reduction: split the sublane-major axis (layout-safe
    # reshape) and add the row-group slabs element-wise -> (8, N_pad).
    partial = loss.reshape(tile_rows // 8, 8, n_pad).sum(axis=0)
    out_ref[...] = partial[None, :, :]


def label_smoothing_bce(logits, labels, smoothing=0.09,
                        target_block_bytes=4 * 1024 * 1024):
    """Mean BCE-with-logits loss with label smoothing (Pallas TPU kernel)."""
    M, N = logits.shape
    n_pad = pl.cdiv(N, 128) * 128

    # Pick the largest row-tile that keeps the f32 logits block ~target_block_bytes.
    tile_rows = max(8, (target_block_bytes // (n_pad * 4)) // 8 * 8)
    tile_rows = min(tile_rows, pl.cdiv(M, 8) * 8)
    m_pad = pl.cdiv(M, tile_rows) * tile_rows
    grid = (m_pad // tile_rows,)
    need_mask = (m_pad != M) or (n_pad != N)

    if need_mask:
        logits = jnp.pad(logits, ((0, m_pad - M), (0, n_pad - N)))
        labels = jnp.pad(labels, ((0, m_pad - M), (0, n_pad - N)))

    kernel = functools.partial(
        _bce_label_smoothing_kernel,
        smoothing=float(smoothing),
        valid_rows=M,
        valid_cols=N,
        tile_rows=tile_rows,
        n_pad=n_pad,
        need_mask=need_mask,
    )

    bytes_accessed = (logits.size * logits.dtype.itemsize
                      + labels.size * labels.dtype.itemsize
                      + grid[0] * 8 * n_pad * 4)
    cost = pl.CostEstimate(flops=10 * M * N,
                           transcendentals=2 * M * N,
                           bytes_accessed=bytes_accessed)

    partials = pl.pallas_call(
        kernel,
        out_shape=jax.ShapeDtypeStruct((grid[0], 8, n_pad), jnp.float32),
        grid_spec=pltpu.PrefetchScalarGridSpec(
            num_scalar_prefetch=0,
            grid=grid,
            in_specs=[
                pl.BlockSpec((tile_rows, n_pad), lambda i: (i, 0)),
                pl.BlockSpec((tile_rows, n_pad), lambda i: (i, 0)),
            ],
            out_specs=pl.BlockSpec((1, 8, n_pad), lambda i: (i, 0, 0)),
        ),
        compiler_params=pltpu.CompilerParams(
            dimension_semantics=("parallel",),
            vmem_limit_bytes=64 * 1024 * 1024,
        ),
        cost_estimate=cost,
    )(logits, labels)

    # Tiny final reduce + mean (the wrapper-side sum is over grid*8*n_pad
    # partials, a negligible fraction of the input).
    return jnp.sum(partials) / jnp.float32(M * N)


def _reference(logits, labels, smoothing=0.09):
    labels = labels.astype(jnp.float32)
    y = jnp.where(labels == 1.0, 1.0 - smoothing, labels)
    y = jnp.where(y == 0.0, smoothing, y)
    x = logits.astype(jnp.float32)
    loss = jnp.maximum(x, 0.0) - x * y + jnp.log1p(jnp.exp(-jnp.abs(x)))
    return jnp.mean(loss)


if __name__ == "__main__":
    key = jax.random.PRNGKey(0)
    k1, k2 = jax.random.split(key)

    batch, num_classes = 16, 256
    logits = jax.random.normal(k1, (batch, num_classes), dtype=jnp.float32)
    # Labels are {0,1} -> bf16 is lossless and halves label HBM traffic.
    labels = jax.random.bernoulli(k2, 0.5, (batch, num_classes)).astype(jnp.bfloat16)

    loss = label_smoothing_bce(logits, labels, smoothing=0.09)
    loss = jax.block_until_ready(loss)

    ref = _reference(logits, labels, smoothing=0.09)
    assert jnp.allclose(loss, ref, rtol=1e-5, atol=1e-5), (loss, ref)
    print("KERNEL_OK")
</pallas_src>

<mosaic_0001>
module attributes {stable_mosaic.version = 11 : i64} {
  func.func @_bce_label_smoothing_kernel(%arg0: i32, %arg1: memref<16x256xf32, #tpu.memory_space<vmem>>, %arg2: memref<16x256xbf16, #tpu.memory_space<vmem>>, %arg3: memref<1x8x256xf32, #tpu.memory_space<vmem>>) attributes {dimension_semantics = [#tpu.dimension_semantics<parallel>], iteration_bounds = array<i64: 1>, scalar_prefetch = 0 : i64, scratch_operands = 0 : i64, tpu.core_type = #tpu.core_type<tc>, window_params = [{transform_indices = @transform_0, window_bounds = array<i64: 16, 256>}, {transform_indices = @transform_1, window_bounds = array<i64: 16, 256>}, {transform_indices = @transform_2, window_bounds = array<i64: 1, 8, 256>}]} {
    %c0 = arith.constant 0 : index
    %c0_0 = arith.constant 0 : index
    %0 = vector.load %arg1[%c0, %c0_0] : memref<16x256xf32, #tpu.memory_space<vmem>>, vector<16x256xf32>
    %c0_1 = arith.constant 0 : index
    %c0_2 = arith.constant 0 : index
    %1 = vector.load %arg2[%c0_1, %c0_2] : memref<16x256xbf16, #tpu.memory_space<vmem>>, vector<16x256xbf16>
    %2 = arith.extf %1 : vector<16x256xbf16> to vector<16x256xf32>
    %cst = arith.constant 1.000000e+00 : f32
    %3 = vector.broadcast %cst : f32 to vector<16x256xf32>
    %4 = arith.cmpf oeq, %2, %3 : vector<16x256xf32>
    %cst_3 = arith.constant 9.100000e-01 : f32
    %5 = vector.broadcast %cst_3 : f32 to vector<16x256xf32>
    %6 = arith.select %4, %5, %2 : vector<16x256xi1>, vector<16x256xf32>
    %cst_4 = arith.constant 0.000000e+00 : f32
    %7 = vector.broadcast %cst_4 : f32 to vector<16x256xf32>
    %8 = arith.cmpf oeq, %6, %7 : vector<16x256xf32>
    %cst_5 = arith.constant 9.000000e-02 : f32
    %9 = vector.broadcast %cst_5 : f32 to vector<16x256xf32>
    %10 = arith.select %8, %9, %6 : vector<16x256xi1>, vector<16x256xf32>
    %cst_6 = arith.constant 0.000000e+00 : f32
    %11 = vector.broadcast %cst_6 : f32 to vector<16x256xf32>
    %12 = arith.maximumf %0, %11 : vector<16x256xf32>
    %13 = arith.mulf %0, %10 : vector<16x256xf32>
    %14 = arith.subf %12, %13 : vector<16x256xf32>
    %15 = math.absf %0 : vector<16x256xf32>
    %cst_7 = arith.constant 0.000000e+00 : f32
    %16 = vector.broadcast %cst_7 : f32 to vector<16x256xf32>
    %17 = arith.subf %16, %15 : vector<16x256xf32>
    %18 = math.exp %17 : vector<16x256xf32>
    %19 = math.log1p %18 : vector<16x256xf32>
    %20 = arith.addf %14, %19 : vector<16x256xf32>
    %21 = vector.shape_cast %20 : vector<16x256xf32> to vector<2x8x256xf32>
    %cst_8 = arith.constant dense<0.000000e+00> : vector<8x256xf32>
    %22 = vector.multi_reduction <add>, %21, %cst_8 [0] : vector<2x8x256xf32> to vector<8x256xf32>
    %23 = vector.shape_cast %22 : vector<8x256xf32> to vector<1x8x256xf32>
    %c0_9 = arith.constant 0 : index
    %c0_10 = arith.constant 0 : index
    %c0_11 = arith.constant 0 : index
    %24 = vector.load %arg3[%c0_9, %c0_10, %c0_11] : memref<1x8x256xf32, #tpu.memory_space<vmem>>, vector<1x8x256xf32>
    tpu.vector_store %arg3[%c0_9, %c0_10, %c0_11], %23 {strides = array<i32>} : memref<1x8x256xf32, #tpu.memory_space<vmem>>, vector<1x8x256xf32>,
    return
  }
  func.func @transform_0(%arg0: i32) -> (i32, i32) {
    %c0_i32 = arith.constant 0 : i32
    %c0_i32_0 = arith.constant 0 : i32
    return %arg0, %c0_i32 : i32, i32
  }
  func.func @transform_1(%arg0: i32) -> (i32, i32) {
    %c0_i32 = arith.constant 0 : i32
    %c0_i32_0 = arith.constant 0 : i32
    return %arg0, %c0_i32 : i32, i32
  }
  func.func @transform_2(%arg0: i32) -> (i32, i32, i32) {
    %c0_i32 = arith.constant 0 : i32
    %c0_i32_0 = arith.constant 0 : i32
    %c0_i32_1 = arith.constant 0 : i32
    return %arg0, %c0_i32, %c0_i32_0 : i32, i32, i32
  }
}

</mosaic_0001>

<llo_original>
// kernel: tpu_custom_call.1
$region0: #{tpu_custom_call.1}
  #allocation0 [shape = 'u32[]', space=smem, size = 0x4, offset = 0x4, fixed_abs, tag = 'smem constant byte address 0x4 - core index']
  #allocation1 [shape = 'u32[144,128]{1,0:T(1,128)}', space=vmem, size = 0x12000, scoped, tag = 'internal scratch']
  %s0 = inlined_call_operand.hbm [shape: f32[16,256], index: 0, kind: input, shape index: {}]
  %s1 = inlined_call_operand.hbm [shape: bf16[16,256], index: 1, kind: input, shape index: {}]
  %s2 = inlined_call_operand.hbm [shape: f32[1,8,256], index: 2, kind: output, shape index: {}]
  %s3 = sld [smem:[#allocation0]]
  $region26: #{tpu_custom_call.1} parent=0
    _
  %s5 = ssub.s32 1, %s3
  %s6 = scalar_select 0, %s5, %s3
  $region1: #{tpu_custom_call.1} parent=0
    #allocation2 [shape = 'u8[16384]{0}', space=vmem, size = 0x4000, scoped, tag = 'input window, operand 0, single buffered']
    #allocation3 [shape = 's32[1]{0}', space=sflag, size = 0x4, scoped, tag = 'scoped memory for tpu_custom_call.1']
    #allocation4 [shape = 's32[1]{0}', space=sflag, size = 0x4, scoped, tag = 'scoped memory for tpu_custom_call.1']
    #allocation5 [shape = 'u8[8192]{0}', space=vmem, size = 0x2000, scoped, tag = 'input window, operand 1, single buffered']
    #allocation6 [shape = 's32[1]{0}', space=sflag, size = 0x4, scoped, tag = 'scoped memory for tpu_custom_call.1']
    #allocation7 [shape = 'u8[8192]{0}', space=vmem, size = 0x2000, scoped, tag = 'output window, operand 0, single buffered']
    %7 = vsyncpa [#allocation3], 0
    %8 = vsyncpa [#allocation6], 0
    %9 = vsyncpa [#allocation4], 0
    // Predicated region
    $region2: #{tpu_custom_call.1} parent=1 // pred_check
      _
    $region3: #{tpu_custom_call.1} parent=1 // pred_check_branch
      %11 = sbr.rel (0) target = $region5
    $region4: #{tpu_custom_call.1} parent=1 // pred_region
      %s13 = ssub.s32 512, 512
      %14 = vsyncadd [#allocation3], %s13
      %s15 = sshll.u32 [#allocation2], 4
      %s16 = int_to_ptr.vmem [resolvable:$true] %s15
      %21 = dma.hbm_to_vmem [thread:$0]  %s0, 512, %s16, [#allocation3], 256, 256, 16
    $region5: #{tpu_custom_call.1} parent=1 // pred_fallthru
      _
    // Predicated region
    $region6: #{tpu_custom_call.1} parent=1 // pred_check
      _
    $region7: #{tpu_custom_call.1} parent=1 // pred_check_branch
      %23 = sbr.rel (0) target = $region9
    $region8: #{tpu_custom_call.1} parent=1 // pred_region
      %s25 = ssub.s32 256, 256
      %26 = vsyncadd [#allocation6], %s25
      %s27 = sshll.u32 [#allocation5], 4
      %s28 = int_to_ptr.vmem [resolvable:$true] %s27
      %33 = dma.hbm_to_vmem [thread:$0]  %s1, 256, %s28, [#allocation6], 128, 128, 8
    $region9: #{tpu_custom_call.1} parent=1 // pred_fallthru
      _
    // Predicated region
    $region10: #{tpu_custom_call.1} parent=1 // pred_check
      _
    $region11: #{tpu_custom_call.1} parent=1 // pred_check_branch
      %35 = sbr.rel (0) target = $region13
    $region12: #{tpu_custom_call.1} parent=1 // pred_region
      %36 = dma.done [#allocation3], 512
    $region13: #{tpu_custom_call.1} parent=1 // pred_fallthru
      _
    // Predicated region
    $region14: #{tpu_custom_call.1} parent=1 // pred_check
      _
    $region15: #{tpu_custom_call.1} parent=1 // pred_check_branch
      %38 = sbr.rel (0) target = $region17
    $region16: #{tpu_custom_call.1} parent=1 // pred_region
      %39 = dma.done [#allocation6], 256
    $region17: #{tpu_custom_call.1} parent=1 // pred_fallthru
      _
    %v40 = vld [vmem:[#allocation2] sm:$0xff]
    %v41 = vld [vmem:[#allocation2 + $0x8] sm:$0xff]
    %v42 = vld [vmem:[#allocation2 + $0x10] sm:$0xff]
    %v43 = vld [vmem:[#allocation2 + $0x18] sm:$0xff]
    %v44 = vld [vmem:[#allocation5] sm:$0xff]
    %v45 = vld [vmem:[#allocation5 + $0x8] sm:$0xff]
    %v46 = vunpack.c.l.bf16 %v44
    %v47 = vunpack.c.h.bf16 %v44
    %v48 = vunpack.c.l.bf16 %v45
    %v49 = vunpack.c.h.bf16 %v45
    %vm50 = vcmp.eq.f32.partialorder %v46, 1.0
    %vm51 = vcmp.eq.f32.partialorder %v47, 1.0
    %vm52 = vcmp.eq.f32.partialorder %v48, 1.0
    %vm53 = vcmp.eq.f32.partialorder %v49, 1.0
    %v54 = vsel %vm50, 0.91, %v46
    %v55 = vsel %vm51, 0.91, %v47
    %v56 = vsel %vm52, 0.91, %v48
    %v57 = vsel %vm53, 0.91, %v49
    %vm58 = vcmp.eq.f32.partialorder %v54, 0.0
    %vm59 = vcmp.eq.f32.partialorder %v55, 0.0
    %vm60 = vcmp.eq.f32.partialorder %v56, 0.0
    %vm61 = vcmp.eq.f32.partialorder %v57, 0.0
    %v62 = vsel %vm58, 0.09, %v54
    %v63 = vsel %vm59, 0.09, %v55
    %v64 = vsel %vm60, 0.09, %v56
    %v65 = vsel %vm61, 0.09, %v57
    %v66 = vmax.f32 %v40, 0.0
    %v67 = vmax.f32 %v41, 0.0
    %v68 = vmax.f32 %v42, 0.0
    %v69 = vmax.f32 %v43, 0.0
    %v70 = vmul.f32 %v40, %v62
    %v71 = vmul.f32 %v41, %v63
    %v72 = vmul.f32 %v42, %v64
    %v73 = vmul.f32 %v43, %v65
    %v74 = vsub.f32 %v66, %v70
    %v75 = vsub.f32 %v67, %v71
    %v76 = vsub.f32 %v68, %v72
    %v77 = vsub.f32 %v69, %v73
    %v78 = vand.u32 2147483647, %v40
    %v79 = vand.u32 2147483647, %v41
    %v80 = vand.u32 2147483647, %v42
    %v81 = vand.u32 2147483647, %v43
    %v82 = vsub.f32 0.0, %v78
    %v83 = vsub.f32 0.0, %v79
    %v84 = vsub.f32 0.0, %v80
    %v85 = vsub.f32 0.0, %v81
    %v86 = vmul.f32 %v82, 1.442695
    %v87 = vpow.pop %v86
    %v88 = vmul.f32 %v83, 1.442695
    %v89 = vpow.pop %v88
    %v90 = vmul.f32 %v84, 1.442695
    %v91 = vpow.pop %v90
    %v92 = vmul.f32 %v85, 1.442695
    %v93 = vpow.pop %v92
    %v94 = vadd.f32 %v87, 1.0
    %v95 = vlog2.pop %v94
    %v96 = vmul.f32 %v95, 0.6931472
    %v97 = vmul.f32 -0.5, %v87
    %v98 = vadd.f32 %v97, 1.0
    %v99 = vmul.f32 %v98, %v87
    %v100 = vand.u32 2147483647, %v87
    %vm101 = vcmp.lt.f32.partialorder %v100, 0.0004427343
    %v102 = vsel %vm101, %v99, %v96
    %v103 = vadd.f32 %v89, 1.0
    %v104 = vlog2.pop %v103
    %v105 = vmul.f32 %v104, 0.6931472
    %v106 = vmul.f32 -0.5, %v89
    %v107 = vadd.f32 %v106, 1.0
    %v108 = vmul.f32 %v107, %v89
    %v109 = vand.u32 2147483647, %v89
    %vm110 = vcmp.lt.f32.partialorder %v109, 0.0004427343
    %v111 = vsel %vm110, %v108, %v105
    %v112 = vadd.f32 %v91, 1.0
    %v113 = vlog2.pop %v112
    %v114 = vmul.f32 %v113, 0.6931472
    %v115 = vmul.f32 -0.5, %v91
    %v116 = vadd.f32 %v115, 1.0
    %v117 = vmul.f32 %v116, %v91
    %v118 = vand.u32 2147483647, %v91
    %vm119 = vcmp.lt.f32.partialorder %v118, 0.0004427343
    %v120 = vsel %vm119, %v117, %v114
    %v121 = vadd.f32 %v93, 1.0
    %v122 = vlog2.pop %v121
    %v123 = vmul.f32 %v122, 0.6931472
    %v124 = vmul.f32 -0.5, %v93
    %v125 = vadd.f32 %v124, 1.0
    %v126 = vmul.f32 %v125, %v93
    %v127 = vand.u32 2147483647, %v93
    %vm128 = vcmp.lt.f32.partialorder %v127, 0.0004427343
    %v129 = vsel %vm128, %v126, %v123
    %v130 = vadd.f32 %v74, %v102
    %v131 = vadd.f32 %v75, %v111
    %v132 = vadd.f32 %v76, %v120
    %v133 = vadd.f32 %v77, %v129
    %v134 = vadd.f32 %v130, %v132
    %v135 = vadd.f32 %v131, %v133
    %136 = vst [vmem:[#allocation7] sm:$0xff] %v134
    %137 = vst [vmem:[#allocation7 + $0x8] sm:$0xff] %v135
    // Predicated region
    $region18: #{tpu_custom_call.1} parent=1 // pred_check
      _
    $region19: #{tpu_custom_call.1} parent=1 // pred_check_branch
      %139 = sbr.rel (0) target = $region21
    $region20: #{tpu_custom_call.1} parent=1 // pred_region
      %s141 = ssub.s32 256, 256
      %142 = vsyncadd [#allocation4], %s141
      %s144 = sshll.u32 [#allocation7], 4
      %s145 = int_to_ptr.vmem [resolvable:$true] %s144
      %147 = dma.vmem_to_hbm [thread:$0]  %s145, 256, %s2, [#allocation4]
    $region21: #{tpu_custom_call.1} parent=1 // pred_fallthru
      _
    // Predicated region
    $region22: #{tpu_custom_call.1} parent=1 // pred_check
      _
    $region23: #{tpu_custom_call.1} parent=1 // pred_check_branch
      %149 = sbr.rel (0) target = $region25
    $region24: #{tpu_custom_call.1} parent=1 // pred_region
      %150 = dma.done [#allocation4], 256
    $region25: #{tpu_custom_call.1} parent=1 // pred_fallthru
      _
    %151 = vsyncpa [#allocation3], 1
    %152 = vsyncpa [#allocation6], 1
    %153 = vsyncpa [#allocation4], 1

</llo_original>
